<compile_context>
chip_gen: v7x
topology: tpu7x:2x2x1
jax: 0.10.0
libtpu: 0.0.40
codegen_flags: <defaults>
</compile_context>

<pallas_src>
import jax
import jax.numpy as jnp
from jax import lax
from jax.experimental import pallas as pl
from jax.experimental.pallas import tpu as pltpu


def _conv1x1_relu_kernel(w_ref, b_ref, x_ref, o_ref):
    # w_ref: (Cin, Cout, 1) f32 VMEM  -- w_ref[ci] is the (Cout, 1) weight column
    # b_ref: (Cout, 1)      f32 VMEM
    # x_ref: (N, Cin, S)    f32 VMEM  -- S = (H+2)*(W+2); spatially zero-padded input
    # o_ref: (N, Cout, S)   f32 VMEM  -- final padded output (flattened spatial dim)
    n_batch, c_in, _ = x_ref.shape

    # relu(relu(y - 1.6) - 0.8) == relu(y - 2.4): fold the constant into the bias.
    b_fold = b_ref[...] - 2.4                        # (Cout, 1)

    for n in range(n_batch):                         # static unroll: N is tiny
        x_n = x_ref[n]                               # (Cin, S), single load
        acc = w_ref[0] * x_n[0:1, :]                 # (Cout,1)*(1,S) -> (Cout,S)
        for ci in range(1, c_in):
            acc = acc + w_ref[ci] * x_n[ci:ci + 1, :]
        # Zero-padded border pixels have x == 0, so they come out as relu(b - 2.4),
        # exactly matching the padding=1 semantics of the 1x1 conv.
        o_ref[n] = jnp.maximum(acc + b_fold, 0.0)    # one coalesced (Cout, S) store


@jax.jit
def model_forward(x, w, b):
    """x: (N, Cin, H, W), w: (Cout, Cin, 1, 1), b: (Cout,) -> (N, Cout, H+2, W+2)."""
    N, Cin, H, W = x.shape
    Cout = w.shape[0]
    Hp, Wp = H + 2, W + 2
    S = Hp * Wp

    xf = x.astype(jnp.float32)
    # padding=1 with a 1x1 kernel: pad the input once (tiny pre-kernel op that fuses
    # under jit); the kernel is then uniform over the padded frame.
    xp = jnp.pad(xf, ((0, 0), (0, 0), (1, 1), (1, 1))).reshape(N, Cin, S)
    # (Cin, Cout, 1) so that w_k[ci] is a sublane vector of per-output-channel weights.
    w_k = w.astype(jnp.float32).reshape(Cout, Cin).T.reshape(Cin, Cout, 1)
    b_k = b.astype(jnp.float32).reshape(Cout, 1)

    out_flat = pl.pallas_call(
        _conv1x1_relu_kernel,
        out_shape=jax.ShapeDtypeStruct((N, Cout, S), jnp.float32),
        in_specs=[
            pl.BlockSpec(memory_space=pltpu.MemorySpace.VMEM),   # weights (1 vreg)
            pl.BlockSpec(memory_space=pltpu.MemorySpace.VMEM),   # bias    (1 vreg)
            pl.BlockSpec(memory_space=pltpu.MemorySpace.VMEM),   # padded input
        ],
        out_specs=pl.BlockSpec(memory_space=pltpu.MemorySpace.VMEM),
    )(w_k, b_k, xp)

    # Contiguous split of the last dim: a bitcast view, no copy / extra kernel.
    return out_flat.reshape(N, Cout, Hp, Wp)


def _reference(x, w, b):
    # Pure-JAX reference (NCHW conv, padding=1) mirroring the PyTorch module.
    y = lax.conv_general_dilated(
        x, w, window_strides=(1, 1), padding=((1, 1), (1, 1)),
        dimension_numbers=("NCHW", "OIHW", "NCHW"))
    y = y + b.reshape(1, -1, 1, 1)
    y = jnp.maximum(y - 1.6, 0.0)
    y = jnp.maximum(y - 0.8, 0.0)
    return y


if __name__ == "__main__":
    key = jax.random.PRNGKey(0)
    kx, kw, kb = jax.random.split(key, 3)

    # Small shapes consistent with the module: N=2, Cin=3, H=W=16 (-> 18x18 output).
    x = jax.random.normal(kx, (2, 3, 16, 16), dtype=jnp.float32)
    # Deterministic synthetic Conv2d(3, 6, 1) parameters.
    w = jax.random.normal(kw, (6, 3, 1, 1), dtype=jnp.float32) * 0.5
    b = jax.random.normal(kb, (6,), dtype=jnp.float32) * 0.5

    out = jax.block_until_ready(model_forward(x, w, b))
    ref = jax.block_until_ready(_reference(x, w, b))

    assert out.shape == (2, 6, 18, 18), out.shape
    assert jnp.allclose(out, ref, atol=1e-5, rtol=1e-5)

    print("KERNEL_OK")
</pallas_src>

<mosaic_0001>
module attributes {stable_mosaic.version = 11 : i64} {
  func.func @_conv1x1_relu_kernel(%arg0: memref<3x6x1xf32, #tpu.memory_space<vmem>>, %arg1: memref<6x1xf32, #tpu.memory_space<vmem>>, %arg2: memref<2x3x324xf32, #tpu.memory_space<vmem>>, %arg3: memref<2x6x324xf32, #tpu.memory_space<vmem>>) attributes {dimension_semantics = [], scalar_prefetch = 0 : i64, scratch_operands = 0 : i64, tpu.core_type = #tpu.core_type<tc>} {
    %c0 = arith.constant 0 : index
    %c0_0 = arith.constant 0 : index
    %0 = vector.load %arg1[%c0, %c0_0] : memref<6x1xf32, #tpu.memory_space<vmem>>, vector<6x1xf32>
    %cst = arith.constant 2.400000e+00 : f32
    %1 = vector.broadcast %cst : f32 to vector<6x1xf32>
    %2 = arith.subf %0, %1 : vector<6x1xf32>
    %c0_1 = arith.constant 0 : index
    %c0_2 = arith.constant 0 : index
    %c0_3 = arith.constant 0 : index
    %3 = vector.load %arg2[%c0_1, %c0_2, %c0_3] : memref<2x3x324xf32, #tpu.memory_space<vmem>>, vector<1x3x324xf32>
    %4 = vector.shape_cast %3 : vector<1x3x324xf32> to vector<3x324xf32>
    %c0_4 = arith.constant 0 : index
    %c0_5 = arith.constant 0 : index
    %c0_6 = arith.constant 0 : index
    %5 = vector.load %arg0[%c0_4, %c0_5, %c0_6] : memref<3x6x1xf32, #tpu.memory_space<vmem>>, vector<1x6x1xf32>
    %6 = vector.shape_cast %5 : vector<1x6x1xf32> to vector<6x1xf32>
    %7 = vector.extract_strided_slice %4 {offsets = [0, 0], sizes = [1, 324], strides = [1, 1]} : vector<3x324xf32> to vector<1x324xf32>
    %8 = vector.broadcast %6 : vector<6x1xf32> to vector<6x324xf32>
    %9 = vector.broadcast %7 : vector<1x324xf32> to vector<6x324xf32>
    %10 = arith.mulf %8, %9 : vector<6x324xf32>
    %c1 = arith.constant 1 : index
    %c0_7 = arith.constant 0 : index
    %c0_8 = arith.constant 0 : index
    %11 = vector.load %arg0[%c1, %c0_7, %c0_8] : memref<3x6x1xf32, #tpu.memory_space<vmem>>, vector<1x6x1xf32>
    %12 = vector.shape_cast %11 : vector<1x6x1xf32> to vector<6x1xf32>
    %13 = vector.extract_strided_slice %4 {offsets = [1, 0], sizes = [1, 324], strides = [1, 1]} : vector<3x324xf32> to vector<1x324xf32>
    %14 = vector.broadcast %12 : vector<6x1xf32> to vector<6x324xf32>
    %15 = vector.broadcast %13 : vector<1x324xf32> to vector<6x324xf32>
    %16 = arith.mulf %14, %15 : vector<6x324xf32>
    %17 = arith.addf %10, %16 : vector<6x324xf32>
    %c2 = arith.constant 2 : index
    %c0_9 = arith.constant 0 : index
    %c0_10 = arith.constant 0 : index
    %18 = vector.load %arg0[%c2, %c0_9, %c0_10] : memref<3x6x1xf32, #tpu.memory_space<vmem>>, vector<1x6x1xf32>
    %19 = vector.shape_cast %18 : vector<1x6x1xf32> to vector<6x1xf32>
    %20 = vector.extract_strided_slice %4 {offsets = [2, 0], sizes = [1, 324], strides = [1, 1]} : vector<3x324xf32> to vector<1x324xf32>
    %21 = vector.broadcast %19 : vector<6x1xf32> to vector<6x324xf32>
    %22 = vector.broadcast %20 : vector<1x324xf32> to vector<6x324xf32>
    %23 = arith.mulf %21, %22 : vector<6x324xf32>
    %24 = arith.addf %17, %23 : vector<6x324xf32>
    %25 = vector.broadcast %2 : vector<6x1xf32> to vector<6x324xf32>
    %26 = arith.addf %24, %25 : vector<6x324xf32>
    %cst_11 = arith.constant 0.000000e+00 : f32
    %27 = vector.broadcast %cst_11 : f32 to vector<6x324xf32>
    %28 = arith.maximumf %26, %27 : vector<6x324xf32>
    %c0_12 = arith.constant 0 : index
    %c0_13 = arith.constant 0 : index
    %c0_14 = arith.constant 0 : index
    %29 = vector.load %arg3[%c0_12, %c0_13, %c0_14] : memref<2x6x324xf32, #tpu.memory_space<vmem>>, vector<1x6x324xf32>
    %30 = vector.shape_cast %29 : vector<1x6x324xf32> to vector<6x324xf32>
    %31 = vector.shape_cast %28 : vector<6x324xf32> to vector<1x6x324xf32>
    tpu.vector_store %arg3[%c0_12, %c0_13, %c0_14], %31 {strides = array<i32>} : memref<2x6x324xf32, #tpu.memory_space<vmem>>, vector<1x6x324xf32>,
    %c1_15 = arith.constant 1 : index
    %c0_16 = arith.constant 0 : index
    %c0_17 = arith.constant 0 : index
    %32 = vector.load %arg2[%c1_15, %c0_16, %c0_17] : memref<2x3x324xf32, #tpu.memory_space<vmem>>, vector<1x3x324xf32>
    %33 = vector.shape_cast %32 : vector<1x3x324xf32> to vector<3x324xf32>
    %c0_18 = arith.constant 0 : index
    %c0_19 = arith.constant 0 : index
    %c0_20 = arith.constant 0 : index
    %34 = vector.load %arg0[%c0_18, %c0_19, %c0_20] : memref<3x6x1xf32, #tpu.memory_space<vmem>>, vector<1x6x1xf32>
    %35 = vector.shape_cast %34 : vector<1x6x1xf32> to vector<6x1xf32>
    %36 = vector.extract_strided_slice %33 {offsets = [0, 0], sizes = [1, 324], strides = [1, 1]} : vector<3x324xf32> to vector<1x324xf32>
    %37 = vector.broadcast %35 : vector<6x1xf32> to vector<6x324xf32>
    %38 = vector.broadcast %36 : vector<1x324xf32> to vector<6x324xf32>
    %39 = arith.mulf %37, %38 : vector<6x324xf32>
    %c1_21 = arith.constant 1 : index
    %c0_22 = arith.constant 0 : index
    %c0_23 = arith.constant 0 : index
    %40 = vector.load %arg0[%c1_21, %c0_22, %c0_23] : memref<3x6x1xf32, #tpu.memory_space<vmem>>, vector<1x6x1xf32>
    %41 = vector.shape_cast %40 : vector<1x6x1xf32> to vector<6x1xf32>
    %42 = vector.extract_strided_slice %33 {offsets = [1, 0], sizes = [1, 324], strides = [1, 1]} : vector<3x324xf32> to vector<1x324xf32>
    %43 = vector.broadcast %41 : vector<6x1xf32> to vector<6x324xf32>
    %44 = vector.broadcast %42 : vector<1x324xf32> to vector<6x324xf32>
    %45 = arith.mulf %43, %44 : vector<6x324xf32>
    %46 = arith.addf %39, %45 : vector<6x324xf32>
    %c2_24 = arith.constant 2 : index
    %c0_25 = arith.constant 0 : index
    %c0_26 = arith.constant 0 : index
    %47 = vector.load %arg0[%c2_24, %c0_25, %c0_26] : memref<3x6x1xf32, #tpu.memory_space<vmem>>, vector<1x6x1xf32>
    %48 = vector.shape_cast %47 : vector<1x6x1xf32> to vector<6x1xf32>
    %49 = vector.extract_strided_slice %33 {offsets = [2, 0], sizes = [1, 324], strides = [1, 1]} : vector<3x324xf32> to vector<1x324xf32>
    %50 = vector.broadcast %48 : vector<6x1xf32> to vector<6x324xf32>
    %51 = vector.broadcast %49 : vector<1x324xf32> to vector<6x324xf32>
    %52 = arith.mulf %50, %51 : vector<6x324xf32>
    %53 = arith.addf %46, %52 : vector<6x324xf32>
    %54 = vector.broadcast %2 : vector<6x1xf32> to vector<6x324xf32>
    %55 = arith.addf %53, %54 : vector<6x324xf32>
    %cst_27 = arith.constant 0.000000e+00 : f32
    %56 = vector.broadcast %cst_27 : f32 to vector<6x324xf32>
    %57 = arith.maximumf %55, %56 : vector<6x324xf32>
    %c1_28 = arith.constant 1 : index
    %c0_29 = arith.constant 0 : index
    %c0_30 = arith.constant 0 : index
    %58 = vector.load %arg3[%c1_28, %c0_29, %c0_30] : memref<2x6x324xf32, #tpu.memory_space<vmem>>, vector<1x6x324xf32>
    %59 = vector.shape_cast %58 : vector<1x6x324xf32> to vector<6x324xf32>
    %60 = vector.shape_cast %57 : vector<6x324xf32> to vector<1x6x324xf32>
    tpu.vector_store %arg3[%c1_28, %c0_29, %c0_30], %60 {strides = array<i32>} : memref<2x6x324xf32, #tpu.memory_space<vmem>>, vector<1x6x324xf32>,
    return
  }
}

</mosaic_0001>

<llo_original>
// kernel: model_forward.1
$region0: #{model_forward.1}
  #allocation0 [shape = 'u32[]', space=smem, size = 0x4, offset = 0x4, fixed_abs, tag = 'smem constant byte address 0x4 - core index']
  #allocation1 [shape = 'u32[144,128]{1,0:T(1,128)}', space=vmem, size = 0x12000, scoped, tag = 'internal scratch']
  %s0 = inlined_call_operand.vmem [shape: f32[3,6,1], index: 0, kind: input, shape index: {}]
  %s1 = inlined_call_operand.vmem [shape: f32[6,1], index: 1, kind: input, shape index: {}]
  %s2 = inlined_call_operand.vmem [shape: f32[2,3,324], index: 2, kind: input, shape index: {}]
  %s3 = inlined_call_operand.vmem [shape: f32[2,6,324], index: 3, kind: output, shape index: {}]
  %s4 = sld [smem:[#allocation0]]
  $region22: #{model_forward.1} parent=0
    _
  %s6 = ssub.s32 1, %s4
  %s7 = scalar_select 0, %s6, %s4
  // Predicated region
  $region2: #{model_forward.1} parent=0 // pred_check
    _
  $region3: #{model_forward.1} parent=0 // pred_check_branch
    %9 = sbr.rel (0) target = $region5
  $region4: #{model_forward.1} parent=0 // pred_region
    _
  $region5: #{model_forward.1} parent=0 // pred_fallthru
    _
  // Predicated region
  $region6: #{model_forward.1} parent=0 // pred_check
    _
  $region7: #{model_forward.1} parent=0 // pred_check_branch
    %11 = sbr.rel (0) target = $region9
  $region8: #{model_forward.1} parent=0 // pred_region
    _
  $region9: #{model_forward.1} parent=0 // pred_fallthru
    _
  // Predicated region
  $region10: #{model_forward.1} parent=0 // pred_check
    _
  $region11: #{model_forward.1} parent=0 // pred_check_branch
    %13 = sbr.rel (0) target = $region13
  $region12: #{model_forward.1} parent=0 // pred_region
    _
  $region13: #{model_forward.1} parent=0 // pred_fallthru
    _
  %v14 = vld [vmem:[%s1] sm:$0x3f]
  %v15 = vsub.f32 %v14, 2.4
  %v16 = vld [vmem:[%s2] sm:$0x77]
  %v17 = vld [vmem:[%s2 + $0x8] sm:$0x7]
  %v18 = vld [vmem:[%s0] sm:$0x3f]
  %20 = vset.pattern.permute.xlu0 0
  %21 = vperm.xlu0 %20, %v18
  %v22 = vpop.permute.xlu0 %21
  %v26 = vlaneseq
  %v27 = vshrl.u32 %v26, 7
  %v28 = vsub.s32 0, %v27
  %v29 = vrot.slane %v16, %v28
  %v30 = vlaneseq
  %v31 = vshrl.u32 %v30, 7
  %v32 = vsub.s32 4, %v31
  %v33 = vrot.slane %v16, %v32
  %v34 = vlaneseq
  %v35 = vshrl.u32 %v34, 7
  %v36 = vsub.s32 0, %v35
  %v37 = vrot.slane %v17, %v36
  %v41 = vlaneseq
  %v42 = vshrl.u32 %v41, 7
  %v43 = vsub.s32 0, %v42
  %v44 = vrot.slane %v29, %v43
  %v45 = vlaneseq
  %v46 = vshrl.u32 %v45, 7
  %v47 = vsub.s32 0, %v46
  %v48 = vrot.slane %v33, %v47
  %v49 = vlaneseq
  %v50 = vshrl.u32 %v49, 7
  %v51 = vsub.s32 0, %v50
  %v52 = vrot.slane %v37, %v51
  %v53 = vmul.f32 %v22, %v44
  %v54 = vmul.f32 %v22, %v48
  %v55 = vmul.f32 %v22, %v52
  %s56 = scalar_lea.vmem %s0, 8
  %v57 = vld [vmem:[%s56] sm:$0x3f]
  %59 = vset.pattern.permute.xlu0 0
  %60 = vperm.xlu0 %59, %v57
  %v61 = vpop.permute.xlu0 %60
  %v63 = vlaneseq
  %v64 = vshrl.u32 %v63, 7
  %v65 = vsub.s32 1, %v64
  %v66 = vrot.slane %v16, %v65
  %v67 = vlaneseq
  %v68 = vshrl.u32 %v67, 7
  %v69 = vsub.s32 5, %v68
  %v70 = vrot.slane %v16, %v69
  %v71 = vlaneseq
  %v72 = vshrl.u32 %v71, 7
  %v73 = vsub.s32 1, %v72
  %v74 = vrot.slane %v17, %v73
  %v78 = vlaneseq
  %v79 = vshrl.u32 %v78, 7
  %v80 = vsub.s32 1, %v79
  %v81 = vrot.slane %v66, %v80
  %v82 = vlaneseq
  %v83 = vshrl.u32 %v82, 7
  %v84 = vsub.s32 1, %v83
  %v85 = vrot.slane %v70, %v84
  %v86 = vlaneseq
  %v87 = vshrl.u32 %v86, 7
  %v88 = vsub.s32 1, %v87
  %v89 = vrot.slane %v74, %v88
  %v90 = vmul.f32 %v61, %v81
  %v91 = vmul.f32 %v61, %v85
  %v92 = vmul.f32 %v61, %v89
  %v93 = vadd.f32 %v53, %v90
  %v94 = vadd.f32 %v54, %v91
  %v95 = vadd.f32 %v55, %v92
  %s96 = scalar_lea.vmem %s0, 16
  %v97 = vld [vmem:[%s96] sm:$0x3f]
  %99 = vset.pattern.permute.xlu0 0
  %100 = vperm.xlu0 %99, %v97
  %v101 = vpop.permute.xlu0 %100
  %v103 = vlaneseq
  %v104 = vshrl.u32 %v103, 7
  %v105 = vsub.s32 2, %v104
  %v106 = vrot.slane %v16, %v105
  %v107 = vlaneseq
  %v108 = vshrl.u32 %v107, 7
  %v109 = vsub.s32 6, %v108
  %v110 = vrot.slane %v16, %v109
  %v111 = vlaneseq
  %v112 = vshrl.u32 %v111, 7
  %v113 = vsub.s32 2, %v112
  %v114 = vrot.slane %v17, %v113
  %v118 = vlaneseq
  %v119 = vshrl.u32 %v118, 7
  %v120 = vsub.s32 2, %v119
  %v121 = vrot.slane %v106, %v120
  %v122 = vlaneseq
  %v123 = vshrl.u32 %v122, 7
  %v124 = vsub.s32 2, %v123
  %v125 = vrot.slane %v110, %v124
  %v126 = vlaneseq
  %v127 = vshrl.u32 %v126, 7
  %v128 = vsub.s32 2, %v127
  %v129 = vrot.slane %v114, %v128
  %v130 = vmul.f32 %v101, %v121
  %v131 = vmul.f32 %v101, %v125
  %v132 = vmul.f32 %v101, %v129
  %v133 = vadd.f32 %v93, %v130
  %v134 = vadd.f32 %v94, %v131
  %v135 = vadd.f32 %v95, %v132
  %137 = vset.pattern.permute.xlu0 0
  %138 = vperm.xlu0 %137, %v15
  %v139 = vpop.permute.xlu0 %138
  %v141 = vadd.f32 %v133, %v139
  %v142 = vadd.f32 %v134, %v139
  %v143 = vadd.f32 %v135, %v139
  %v144 = vmax.f32 %v141, 0.0
  %v145 = vmax.f32 %v142, 0.0
  %v146 = vmax.f32 %v143, 0.0
  %147 = vst [vmem:[%s3] sm:$0x3f] %v144
  %148 = vst [vmem:[%s3 + $0x8] sm:$0x3f] %v145
  %vm149 = vcmask 553984
  %150 = vst.msk [vmem:[%s3 + $0x10] sm:$0x3f] %vm149, %v146
  %s151 = scalar_lea.vmem %s2, 12
  %v152 = vld [vmem:[%s151] sm:$0x77]
  %v153 = vld [vmem:[%s151 + $0x8] sm:$0x7]
  %v154 = vld [vmem:[%s0] sm:$0x3f]
  %156 = vset.pattern.permute.xlu0 0
  %157 = vperm.xlu0 %156, %v154
  %v158 = vpop.permute.xlu0 %157
  %v162 = vlaneseq
  %v163 = vshrl.u32 %v162, 7
  %v164 = vsub.s32 0, %v163
  %v165 = vrot.slane %v152, %v164
  %v166 = vlaneseq
  %v167 = vshrl.u32 %v166, 7
  %v168 = vsub.s32 4, %v167
  %v169 = vrot.slane %v152, %v168
  %v170 = vlaneseq
  %v171 = vshrl.u32 %v170, 7
  %v172 = vsub.s32 0, %v171
  %v173 = vrot.slane %v153, %v172
  %v177 = vlaneseq
  %v178 = vshrl.u32 %v177, 7
  %v179 = vsub.s32 0, %v178
  %v180 = vrot.slane %v165, %v179
  %v181 = vlaneseq
  %v182 = vshrl.u32 %v181, 7
  %v183 = vsub.s32 0, %v182
  %v184 = vrot.slane %v169, %v183
  %v185 = vlaneseq
  %v186 = vshrl.u32 %v185, 7
  %v187 = vsub.s32 0, %v186
  %v188 = vrot.slane %v173, %v187
  %v189 = vmul.f32 %v158, %v180
  %v190 = vmul.f32 %v158, %v184
  %v191 = vmul.f32 %v158, %v188
  %v192 = vld [vmem:[%s56] sm:$0x3f]
  %194 = vset.pattern.permute.xlu0 0
  %195 = vperm.xlu0 %194, %v192
  %v196 = vpop.permute.xlu0 %195
  %v198 = vlaneseq
  %v199 = vshrl.u32 %v198, 7
  %v200 = vsub.s32 1, %v199
  %v201 = vrot.slane %v152, %v200
  %v202 = vlaneseq
  %v203 = vshrl.u32 %v202, 7
  %v204 = vsub.s32 5, %v203
  %v205 = vrot.slane %v152, %v204
  %v206 = vlaneseq
  %v207 = vshrl.u32 %v206, 7
  %v208 = vsub.s32 1, %v207
  %v209 = vrot.slane %v153, %v208
  %v213 = vlaneseq
  %v214 = vshrl.u32 %v213, 7
  %v215 = vsub.s32 1, %v214
  %v216 = vrot.slane %v201, %v215
  %v217 = vlaneseq
  %v218 = vshrl.u32 %v217, 7
  %v219 = vsub.s32 1, %v218
  %v220 = vrot.slane %v205, %v219
  %v221 = vlaneseq
  %v222 = vshrl.u32 %v221, 7
  %v223 = vsub.s32 1, %v222
  %v224 = vrot.slane %v209, %v223
  %v225 = vmul.f32 %v196, %v216
  %v226 = vmul.f32 %v196, %v220
  %v227 = vmul.f32 %v196, %v224
  %v228 = vadd.f32 %v189, %v225
  %v229 = vadd.f32 %v190, %v226
  %v230 = vadd.f32 %v191, %v227
  %v231 = vld [vmem:[%s96] sm:$0x3f]
  %233 = vset.pattern.permute.xlu0 0
  %234 = vperm.xlu0 %233, %v231
  %v235 = vpop.permute.xlu0 %234
  %v237 = vlaneseq
  %v238 = vshrl.u32 %v237, 7
  %v239 = vsub.s32 2, %v238
  %v240 = vrot.slane %v152, %v239
  %v241 = vlaneseq
  %v242 = vshrl.u32 %v241, 7
  %v243 = vsub.s32 6, %v242
  %v244 = vrot.slane %v152, %v243
  %v245 = vlaneseq
  %v246 = vshrl.u32 %v245, 7
  %v247 = vsub.s32 2, %v246
  %v248 = vrot.slane %v153, %v247
  %v252 = vlaneseq
  %v253 = vshrl.u32 %v252, 7
  %v254 = vsub.s32 2, %v253
  %v255 = vrot.slane %v240, %v254
  %v256 = vlaneseq
  %v257 = vshrl.u32 %v256, 7
  %v258 = vsub.s32 2, %v257
  %v259 = vrot.slane %v244, %v258
  %v260 = vlaneseq
  %v261 = vshrl.u32 %v260, 7
  %v262 = vsub.s32 2, %v261
  %v263 = vrot.slane %v248, %v262
  %v264 = vmul.f32 %v235, %v255
  %v265 = vmul.f32 %v235, %v259
  %v266 = vmul.f32 %v235, %v263
  %v267 = vadd.f32 %v228, %v264
  %v268 = vadd.f32 %v229, %v265
  %v269 = vadd.f32 %v230, %v266
  %v270 = vadd.f32 %v267, %v139
  %v271 = vadd.f32 %v268, %v139
  %v272 = vadd.f32 %v269, %v139
  %v273 = vmax.f32 %v270, 0.0
  %v274 = vmax.f32 %v271, 0.0
  %v275 = vmax.f32 %v272, 0.0
  %s276 = scalar_lea.vmem %s3, 24
  %277 = vst [vmem:[%s276] sm:$0x3f] %v273
  %278 = vst [vmem:[%s276 + $0x8] sm:$0x3f] %v274
  %279 = vst.msk [vmem:[%s276 + $0x10] sm:$0x3f] %vm149, %v275
  // Predicated region
  $region14: #{model_forward.1} parent=0 // pred_check
    _
  $region15: #{model_forward.1} parent=0 // pred_check_branch
    %281 = sbr.rel (0) target = $region17
  $region16: #{model_forward.1} parent=0 // pred_region
    _
  $region17: #{model_forward.1} parent=0 // pred_fallthru
    _
  // Predicated region
  $region18: #{model_forward.1} parent=0 // pred_check
    _
  $region19: #{model_forward.1} parent=0 // pred_check_branch
    %283 = sbr.rel (0) target = $region21
  $region20: #{model_forward.1} parent=0 // pred_region
    _
  $region21: #{model_forward.1} parent=0 // pred_fallthru
    _

</llo_original>
